<compile_context>
chip_gen: v6e
topology: v6e:2x2x1
jax: 0.10.0
libtpu: 0.0.40
codegen_flags: <defaults>
</compile_context>

<pallas_src>
import jax
import jax.numpy as jnp
from jax import lax
from jax.experimental import pallas as pl
from jax.experimental.pallas import tpu as pltpu


REP_DIM = 1

# Below this input size, skip Pallas entirely (launch + single-step overhead
# dwarfs the math).
_SMALL_PROBLEM_BYTES = 2 * 1024 * 1024

# Per-batch-row VMEM extras: lane-padded f32 accumulator (128 * 4 B) plus the
# double-buffered, lane-padded (., 1) output block.  Sized generously.
_ROW_EXTRA_BYTES = 2048


def _round_up(v, m):
    return -(-v // m) * m


def _round_down(v, m):
    return (v // m) * m


def _sublane_multiple(itemsize):
    # Packed sublane count: 8 for f32, 16 for bf16, 32 for int8/fp8.
    return max(8, 32 // max(int(itemsize), 1))


def _device_vmem_and_cores():
    """(physical VMEM bytes per TensorCore, TensorCores per chip), with fallbacks."""
    vmem_cap = None
    try:
        vmem_cap = int(pltpu.get_tpu_info().vmem_capacity_bytes)
    except Exception:
        pass
    if vmem_cap is None:
        try:
            kind = jax.devices()[0].device_kind.lower()
            vmem_cap = 64 * 1024 * 1024 if "v7" in kind else 128 * 1024 * 1024
        except Exception:
            vmem_cap = 64 * 1024 * 1024  # conservative (v7x-sized)
    # v7x (64 MiB/TC) is the generation with 2 TensorCores per chip.
    num_cores = 2 if vmem_cap <= 64 * 1024 * 1024 else 1
    return vmem_cap, num_cores


# ----------------------------------------------------------------------------
# Kernels
# ----------------------------------------------------------------------------
def _flos_kernel_single(x_ref, w_ref, o_ref):
    """Full-E tile: one VPU multiply + one XLU lane reduce, no accumulator."""
    x = x_ref[...].astype(jnp.float32)
    w = w_ref[...].astype(jnp.float32)
    o_ref[...] = jnp.sum(x * w, axis=-1, keepdims=True).astype(o_ref.dtype)


def _make_flos_kernel_tiled(tile_e, emb, needs_mask):
    """E-tiled reduction with a lane-wise (tile_b, 128) f32 accumulator."""
    n_folds = tile_e // 128  # tile_e is always a multiple of 128 on this path

    def kernel(x_ref, w_ref, o_ref, acc_ref):
        k = pl.program_id(1)

        @pl.when(k == 0)
        def _():
            acc_ref[...] = jnp.zeros_like(acc_ref)

        prod = x_ref[...].astype(jnp.float32) * w_ref[...].astype(jnp.float32)
        if needs_mask:
            # Zero the out-of-range tail of the last (partial) E block so the
            # padded garbage never enters the accumulator.
            col = k * tile_e + lax.broadcasted_iota(jnp.int32, (1, tile_e), 1)
            prod = jnp.where(col < emb, prod, 0.0)

        # Fold tile_e lanes down to one 128-lane column per row using
        # vreg-aligned slices (pure VALU adds, balanced tree).  The XLU
        # cross-lane reduce happens once, on the final k step.
        chunks = [prod[:, c * 128:(c + 1) * 128] for c in range(n_folds)]
        while len(chunks) > 1:
            nxt = [chunks[i] + chunks[i + 1] for i in range(0, len(chunks) - 1, 2)]
            if len(chunks) % 2:
                nxt.append(chunks[-1])
            chunks = nxt
        acc_ref[...] += chunks[0]

        @pl.when(k == pl.num_programs(1) - 1)
        def _():
            o_ref[...] = jnp.sum(
                acc_ref[...], axis=-1, keepdims=True
            ).astype(o_ref.dtype)

    return kernel


# ----------------------------------------------------------------------------
# Tiling policy
# ----------------------------------------------------------------------------
def _pick_tile_b(batch, rows_cap, sub, num_cores):
    """Largest legal batch tile given a VMEM row budget and TC count."""
    rows_cap = max(sub, _round_down(max(rows_cap, sub), sub))
    if num_cores <= 1:
        # Single TensorCore (v5e/v6e): fewest, largest steps is strictly best
        # for a mem-bound op.
        return batch if batch <= rows_cap else rows_cap
    if batch <= sub:
        return batch
    # v7x: the "parallel" batch axis shards across 2 TCs -> prefer an even
    # step count, and >= 4 steps even when everything would fit in one tile.
    upper = min(rows_cap, max(sub, _round_up(-(-batch // 4), sub)))
    tile_b = upper
    for _ in range(16):
        if tile_b < sub:
            break
        if (-(-batch // tile_b)) % 2 == 0:
            return tile_b
        tile_b -= sub
    return upper


def _choose_tiles(batch, emb, x_itemsize, w_itemsize, budget_bytes, num_cores):
    """Pick (tile_b, tile_e, k_steps) so double-buffered tiles fit the budget."""
    sub = _sublane_multiple(x_itemsize)

    def rows_for(tile_e):
        # Double-buffered (1, tile_e) weight, 8-sublane padded.
        fixed = 2 * 8 * tile_e * w_itemsize
        avail = budget_bytes - fixed
        if avail <= 0:
            return 0
        # Double-buffered x rows + accumulator/output padding.
        return avail // (2 * tile_e * x_itemsize + _ROW_EXTRA_BYTES)

    full_rows = rows_for(emb)
    if full_rows >= sub:
        # Fast path: full embedding in one tile, no reduction steps.
        tile_e = emb
        k_steps = 1
        rows_cap = full_rows
    else:
        # Huge E: tile the reduction with lane-aligned (multiple-of-128)
        # blocks.  Bias tile_b >= 64 so the repeated (1, tile_e) weight DMA
        # stays a negligible share of HBM traffic.
        target_rows = min(_round_up(batch, sub), max(64, sub))
        denom = 16 * w_itemsize + 2 * target_rows * x_itemsize
        tile_e = (budget_bytes - target_rows * _ROW_EXTRA_BYTES) // max(denom, 1)
        tile_e = max(128, _round_down(tile_e, 128))
        tile_e = min(tile_e, _round_up(emb, 128))
        k_steps = -(-emb // tile_e)
        rows_cap = max(sub, rows_for(tile_e))
        if k_steps == 1:  # degenerate: budget fits full E after all
            tile_e = emb
            rows_cap = max(sub, rows_for(emb))

    tile_b = _pick_tile_b(batch, rows_cap, sub, num_cores)
    return tile_b, tile_e, k_steps


# ----------------------------------------------------------------------------
# Forward
# ----------------------------------------------------------------------------
def gtt_flos_forward(x, weight, *, use_pallas=None, vmem_budget_bytes=None):
    """Forward pass of GTT_FLOS: y = x @ weight.T (no bias).

    Args:
      x: (batch, embedding_size) array.
      weight: (rep_dim=1, embedding_size) array (PyTorch Linear layout).
      use_pallas: force (True) / forbid (False) the Pallas path; None = auto.
      vmem_budget_bytes: optional override of the VMEM tiling budget (testing).
    Returns:
      (batch, rep_dim) array in x.dtype.
    """
    batch, emb = x.shape
    rep_dim, emb_w = weight.shape
    assert emb == emb_w, "embedding size mismatch"
    assert rep_dim == REP_DIM, "GTT_FLOS has rep_dim == 1"

    if use_pallas is None:
        use_pallas = (batch * emb * x.dtype.itemsize) >= _SMALL_PROBLEM_BYTES
    if not use_pallas:
        return (x @ weight.T).astype(x.dtype)

    vmem_cap, num_cores = _device_vmem_and_cores()
    # Scoped-VMEM limit: 48 MiB on v7x (64 MiB/TC physical), ~96 MiB on
    # v5e/v6e (128 MiB physical).  Budget leaves headroom for compiler scratch.
    vmem_limit = min((vmem_cap * 3) // 4, 100 * 1024 * 1024)
    budget = max(16 * 1024 * 1024, vmem_limit - 16 * 1024 * 1024)
    if vmem_budget_bytes is not None:
        budget = int(vmem_budget_bytes)

    tile_b, tile_e, k_steps = _choose_tiles(
        batch, emb, x.dtype.itemsize, weight.dtype.itemsize, budget, num_cores)
    b_steps = -(-batch // tile_b)

    cost = pl.CostEstimate(
        flops=2 * batch * emb,
        transcendentals=0,
        bytes_accessed=(batch * emb * x.dtype.itemsize
                        + b_steps * k_steps * tile_e * weight.dtype.itemsize
                        + batch * rep_dim * x.dtype.itemsize),
    )

    if k_steps == 1:
        grid = (b_steps,)
        kernel = _flos_kernel_single
        in_specs = [
            pl.BlockSpec((tile_b, emb), lambda i: (i, 0)),
            pl.BlockSpec((1, emb), lambda i: (0, 0)),
        ]
        out_specs = pl.BlockSpec((tile_b, rep_dim), lambda i: (i, 0))
        scratch_shapes = []
        dim_sem = ("parallel",)
    else:
        grid = (b_steps, k_steps)
        kernel = _make_flos_kernel_tiled(tile_e, emb,
                                         needs_mask=(emb % tile_e != 0))
        in_specs = [
            pl.BlockSpec((tile_b, tile_e), lambda i, k: (i, k)),
            pl.BlockSpec((1, tile_e), lambda i, k: (0, k)),
        ]
        out_specs = pl.BlockSpec((tile_b, rep_dim), lambda i, k: (i, 0))
        scratch_shapes = [pltpu.VMEM((tile_b, 128), jnp.float32)]
        dim_sem = ("parallel", "arbitrary")

    return pl.pallas_call(
        kernel,
        out_shape=jax.ShapeDtypeStruct((batch, rep_dim), x.dtype),
        grid_spec=pltpu.PrefetchScalarGridSpec(
            num_scalar_prefetch=0,
            grid=grid,
            in_specs=in_specs,
            out_specs=out_specs,
            scratch_shapes=scratch_shapes,
        ),
        compiler_params=pltpu.CompilerParams(
            dimension_semantics=dim_sem,
            vmem_limit_bytes=int(vmem_limit),
        ),
        cost_estimate=cost,
    )(x, weight)


if __name__ == "__main__":
    key = jax.random.PRNGKey(0)
    k_x, k_w, k_x2, k_x3 = jax.random.split(key, 4)

    # --- test 1: tiny problem, full-E fast path -----------------------------
    batch, embedding_size = 8, 32
    x = jax.random.normal(k_x, (batch, embedding_size), dtype=jnp.float32)
    bound = 1.0 / (embedding_size ** 0.5)
    weight = jax.random.uniform(k_w, (REP_DIM, embedding_size), jnp.float32,
                                -bound, bound)
    y = gtt_flos_forward(x, weight, use_pallas=True)
    jax.block_until_ready(y)
    assert y.shape == (batch, REP_DIM)
    assert jnp.allclose(y, x @ weight.T, atol=1e-5, rtol=1e-5)

    # --- test 2: batch not a multiple of the tile (partial last tile) -------
    batch2, emb2 = 20, 256
    x2 = jax.random.normal(k_x2, (batch2, emb2), dtype=jnp.float32)
    bound2 = 1.0 / (emb2 ** 0.5)
    w2 = jax.random.uniform(k_w, (REP_DIM, emb2), jnp.float32, -bound2, bound2)
    y2 = gtt_flos_forward(x2, w2, use_pallas=True)
    jax.block_until_ready(y2)
    assert jnp.allclose(y2, x2 @ w2.T, atol=1e-5, rtol=1e-5)

    # --- test 3: E-tiled path with masked ragged tail (tiny forced budget) --
    batch3, emb3 = 24, 600
    x3 = jax.random.normal(k_x3, (batch3, emb3), dtype=jnp.float32)
    bound3 = 1.0 / (emb3 ** 0.5)
    w3 = jax.random.uniform(k_w, (REP_DIM, emb3), jnp.float32, -bound3, bound3)
    y3 = gtt_flos_forward(x3, w3, use_pallas=True, vmem_budget_bytes=64 * 1024)
    jax.block_until_ready(y3)
    assert jnp.allclose(y3, x3 @ w3.T, atol=1e-4, rtol=1e-4)

    print("KERNEL_OK")
</pallas_src>

<mosaic_0001>
module attributes {stable_mosaic.version = 11 : i64} {
  func.func @_flos_kernel_single(%arg0: i32, %arg1: memref<8x32xf32, #tpu.memory_space<vmem>>, %arg2: memref<1x32xf32, #tpu.memory_space<vmem>>, %arg3: memref<8x1xf32, #tpu.memory_space<vmem>>) attributes {dimension_semantics = [#tpu.dimension_semantics<parallel>], iteration_bounds = array<i64: 1>, scalar_prefetch = 0 : i64, scratch_operands = 0 : i64, tpu.core_type = #tpu.core_type<tc>, window_params = [{transform_indices = @transform_0, window_bounds = array<i64: 8, 32>}, {pipeline_mode = #tpu.pipeline_mode<synchronous>, transform_indices = @transform_1, window_bounds = array<i64: 1, 32>}, {transform_indices = @transform_2, window_bounds = array<i64: 8, 1>}]} {
    %c0 = arith.constant 0 : index
    %c0_0 = arith.constant 0 : index
    %0 = vector.load %arg1[%c0, %c0_0] : memref<8x32xf32, #tpu.memory_space<vmem>>, vector<8x32xf32>
    %c0_1 = arith.constant 0 : index
    %c0_2 = arith.constant 0 : index
    %1 = vector.load %arg2[%c0_1, %c0_2] : memref<1x32xf32, #tpu.memory_space<vmem>>, vector<1x32xf32>
    %2 = vector.broadcast %1 : vector<1x32xf32> to vector<8x32xf32>
    %3 = arith.mulf %0, %2 : vector<8x32xf32>
    %cst = arith.constant dense<0.000000e+00> : vector<8xf32>
    %4 = vector.multi_reduction <add>, %3, %cst [1] : vector<8x32xf32> to vector<8xf32>
    %5 = vector.shape_cast %4 : vector<8xf32> to vector<8x1xf32>
    %c0_3 = arith.constant 0 : index
    %c0_4 = arith.constant 0 : index
    %6 = vector.load %arg3[%c0_3, %c0_4] : memref<8x1xf32, #tpu.memory_space<vmem>>, vector<8x1xf32>
    tpu.vector_store %arg3[%c0_3, %c0_4], %5 {strides = array<i32>} : memref<8x1xf32, #tpu.memory_space<vmem>>, vector<8x1xf32>,
    return
  }
  func.func @transform_0(%arg0: i32) -> (i32, i32) {
    %c0_i32 = arith.constant 0 : i32
    %c0_i32_0 = arith.constant 0 : i32
    return %arg0, %c0_i32 : i32, i32
  }
  func.func @transform_1(%arg0: i32) -> (i32, i32) {
    %c0_i32 = arith.constant 0 : i32
    %c0_i32_0 = arith.constant 0 : i32
    %c0_i32_1 = arith.constant 0 : i32
    return %c0_i32, %c0_i32_0 : i32, i32
  }
  func.func @transform_2(%arg0: i32) -> (i32, i32) {
    %c0_i32 = arith.constant 0 : i32
    %c0_i32_0 = arith.constant 0 : i32
    return %arg0, %c0_i32 : i32, i32
  }
}

</mosaic_0001>

<llo_original>
// kernel: tpu_custom_call.1
$region0: #{tpu_custom_call.1}
  #allocation0 [shape = 'u32[]', space=smem, size = 0x4, offset = 0x4, fixed_abs, tag = 'smem constant byte address 0x4 - core index']
  #allocation1 [shape = 'u32[144,128]{1,0:T(1,128)}', space=vmem, size = 0x12000, scoped, tag = 'internal scratch']
  %s0 = inlined_call_operand.hbm [shape: f32[8,32], index: 0, kind: input, shape index: {}]
  %s1 = inlined_call_operand.vmem [shape: f32[1,32], index: 1, kind: input, shape index: {}]
  %s2 = inlined_call_operand.vmem [shape: f32[8,1], index: 2, kind: output, shape index: {}]
  %s3 = sld [smem:[#allocation0]]
  $region22: #{tpu_custom_call.1} parent=0
    _
  %s5 = ssub.s32 1, %s3
  %s6 = scalar_select 0, %s5, %s3
  $region1: #{tpu_custom_call.1} parent=0
    #allocation2 [shape = 'u8[4096]{0}', space=vmem, size = 0x1000, scoped, tag = 'input window, operand 0, single buffered']
    #allocation3 [shape = 's32[1]{0}', space=sflag, size = 0x4, scoped, tag = 'scoped memory for tpu_custom_call.1']
    %7 = vsyncpa [#allocation3], 0
    // Predicated region
    $region2: #{tpu_custom_call.1} parent=1 // pred_check
      _
    $region3: #{tpu_custom_call.1} parent=1 // pred_check_branch
      %9 = sbr.rel (0) target = $region5
    $region4: #{tpu_custom_call.1} parent=1 // pred_region
      %s11 = ssub.s32 128, 128
      %12 = vsyncadd [#allocation3], %s11
      %s14 = sshll.u32 [#allocation2], 4
      %s15 = int_to_ptr.vmem [resolvable:$true] %s14
      %17 = dma.hbm_to_vmem [thread:$0]  %s0, 128, %s15, [#allocation3]
    $region5: #{tpu_custom_call.1} parent=1 // pred_fallthru
      _
    // Predicated region
    $region6: #{tpu_custom_call.1} parent=1 // pred_check
      _
    $region7: #{tpu_custom_call.1} parent=1 // pred_check_branch
      %19 = sbr.rel (0) target = $region9
    $region8: #{tpu_custom_call.1} parent=1 // pred_region
      _
    $region9: #{tpu_custom_call.1} parent=1 // pred_fallthru
      _
    // Predicated region
    $region10: #{tpu_custom_call.1} parent=1 // pred_check
      _
    $region11: #{tpu_custom_call.1} parent=1 // pred_check_branch
      %21 = sbr.rel (0) target = $region13
    $region12: #{tpu_custom_call.1} parent=1 // pred_region
      %22 = dma.done [#allocation3], 128
    $region13: #{tpu_custom_call.1} parent=1 // pred_fallthru
      _
    %v23 = vld [vmem:[#allocation2] sm:$0xff]
    %v24 = vld [vmem:[%s1] sm:$0x1]
    %v26 = vlaneseq
    %v27 = vshrl.u32 %v26, 7
    %v28 = vsub.s32 0, %v27
    %v29 = vrot.slane %v24, %v28
    %v31 = vmul.f32 %v23, %v29
    %vm32 = vcmask 261120
    %v33 = vsel %vm32, %v31, 0.0
    %34 = vadd.xlane.f32.xlu0 %v33
    %v35 = vpop.xlane.xlu0 %34
    %vm36 = vcmask 7168
    %37 = vst.msk [vmem:[%s2] sm:$0xff] %vm36, %v35
    // Predicated region
    $region14: #{tpu_custom_call.1} parent=1 // pred_check
      _
    $region15: #{tpu_custom_call.1} parent=1 // pred_check_branch
      %39 = sbr.rel (0) target = $region17
    $region16: #{tpu_custom_call.1} parent=1 // pred_region
      _
    $region17: #{tpu_custom_call.1} parent=1 // pred_fallthru
      _
    // Predicated region
    $region18: #{tpu_custom_call.1} parent=1 // pred_check
      _
    $region19: #{tpu_custom_call.1} parent=1 // pred_check_branch
      %41 = sbr.rel (0) target = $region21
    $region20: #{tpu_custom_call.1} parent=1 // pred_region
      _
    $region21: #{tpu_custom_call.1} parent=1 // pred_fallthru
      _
    %42 = vsyncpa [#allocation3], 1

</llo_original>
